<compile_context>
chip_gen: v6e
topology: v6e:2x2x1
jax: 0.10.0
libtpu: 0.0.40
codegen_flags: <defaults>
</compile_context>

<pallas_src>
import math
import functools

import jax
import jax.numpy as jnp
from jax.experimental import pallas as pl
from jax.experimental.pallas import tpu as pltpu

_LANE = 128
_MIB = 1024 * 1024


def _round_up(v, m):
    return (v + m - 1) // m * m


def _tpu_vmem_bytes_and_two_tc():
    """Physical VMEM per core and whether the chip has 2 TensorCores (v7x)."""
    vmem = None
    try:
        vmem = int(pltpu.get_tpu_info().vmem_capacity_bytes)
    except Exception:
        vmem = None
    two_tc = False
    try:
        kind = jax.devices()[0].device_kind.lower()
        two_tc = "7" in kind  # v7x is the only 2-TensorCore generation
    except Exception:
        pass
    if vmem is None:
        vmem = 64 * _MIB if two_tc else 128 * _MIB  # conservative fallback
    return vmem, two_tc


def _pad_contract_dim(n):
    """Lane-dense padding for a contraction dim; prefer a 256 multiple
    (v6e/v7x MXU is 256-wide) when the extra padding is modest."""
    p128 = _round_up(n, 128)
    p256 = _round_up(n, 256)
    if p256 != p128 and (p256 - n) <= max(32, n // 4):
        return p256
    return p128


def _resident_spec(block_shape, index_map, nbytes):
    """BlockSpec for a grid-invariant block (constant index_map => fetched
    once). For large blocks, also drop the useless second pipeline buffer."""
    if nbytes >= 512 * 1024:
        try:
            return pl.BlockSpec(block_shape, index_map,
                                pipeline_mode=pl.Buffered(1))
        except Exception:
            pass  # older API: fall back to default buffering
    return pl.BlockSpec(block_shape, index_map)


# ----------------------------- kernel bodies ------------------------------ #

def _erf_approx(x):
    # Abramowitz & Stegun 7.1.26 rational approximation (max abs err ~1.5e-7,
    # far below bf16 noise).
    a1, a2, a3, a4, a5 = (0.254829592, -0.284496736, 1.421413741,
                          -1.453152027, 1.061405429)
    p = 0.3275911
    s = jnp.where(x >= 0.0, 1.0, -1.0)
    ax = jnp.abs(x)
    # EUP reciprocal (free slot under MXU work) instead of a VALU divide.
    t = pl.reciprocal(1.0 + p * ax, approx=True)
    poly = ((((a5 * t + a4) * t + a3) * t + a2) * t + a1) * t
    return s * (1.0 - poly * jnp.exp(-ax * ax))


def _gelu_exact(x):
    # PyTorch nn.GELU() default = exact erf formulation.
    return 0.5 * x * (1.0 + _erf_approx(x * (1.0 / math.sqrt(2.0))))


def _mlp_kernel_resident(x_ref, w1_ref, b1_ref, w2_ref, b2_ref, o_ref):
    """Whole hidden dim resident in VMEM: one pass, no accumulator scratch."""
    h = jnp.dot(x_ref[...], w1_ref[...], preferred_element_type=jnp.float32)
    h = _gelu_exact(h + b1_ref[...])
    y = jnp.dot(h.astype(w2_ref.dtype), w2_ref[...],
                preferred_element_type=jnp.float32)
    o_ref[...] = (y + b2_ref[...]).astype(o_ref.dtype)


def _mlp_kernel_streamed(x_ref, w1_ref, b1_ref, w2_ref, b2_ref, o_ref, acc_ref):
    """Hidden dim streamed in K-tiles on an 'arbitrary' grid axis."""
    k = pl.program_id(1)

    h = jnp.dot(x_ref[...], w1_ref[...], preferred_element_type=jnp.float32)
    h = _gelu_exact(h + b1_ref[...])
    part = jnp.dot(h.astype(w2_ref.dtype), w2_ref[...],
                   preferred_element_type=jnp.float32)

    # Initialize with the first partial product (no zero-fill pass).
    @pl.when(k == 0)
    def _():
        acc_ref[...] = part

    @pl.when(k > 0)
    def _():
        acc_ref[...] += part

    @pl.when(k == pl.num_programs(1) - 1)
    def _():
        o_ref[...] = (acc_ref[...] + b2_ref[...]).astype(o_ref.dtype)


# ----------------------------- host wrappers ------------------------------ #

def prepare_mlp_params(w1, b1, w2, b2, compute_dtype=jnp.bfloat16):
    """Pad + cast the Mlp weights ONCE (outside the per-call path).

    w1: (Cin, Chid), b1: (Chid,), w2: (Chid, Cout), b2: (Cout,).
    Zero padding is exact: padded x cols meet zero W1 rows, gelu(0)+0-bias
    meets zero W2 rows, padded output cols are sliced away.
    """
    Cin, Chid = w1.shape
    Cout = w2.shape[1]
    Cin_p = _pad_contract_dim(Cin)
    Chid_p = _pad_contract_dim(Chid)
    Cout_p = _round_up(Cout, _LANE)

    w1_p = jnp.pad(w1.astype(compute_dtype),
                   ((0, Cin_p - Cin), (0, Chid_p - Chid)))
    b1_p = jnp.pad(b1.astype(jnp.float32), (0, Chid_p - Chid)).reshape(1, Chid_p)
    w2_p = jnp.pad(w2.astype(compute_dtype),
                   ((0, Chid_p - Chid), (0, Cout_p - Cout)))
    b2_p = jnp.pad(b2.astype(jnp.float32), (0, Cout_p - Cout)).reshape(1, Cout_p)
    return w1_p, b1_p, w2_p, b2_p, Cout


@functools.partial(jax.jit, static_argnames=("out_features",))
def mlp_forward_prepared(x, w1_p, b1_p, w2_p, b2_p, *, out_features):
    """x: (..., Cin). Weights already padded/cast by prepare_mlp_params."""
    orig_shape = x.shape
    Cin = orig_shape[-1]
    Cin_p, Chid_p = w1_p.shape
    Cout_p = w2_p.shape[1]
    compute_dtype = w1_p.dtype
    out_dtype = x.dtype
    cd = jnp.dtype(compute_dtype).itemsize
    od = jnp.dtype(out_dtype).itemsize

    M = 1
    for d in orig_shape[:-1]:
        M *= d

    vmem_phys, two_tc = _tpu_vmem_bytes_and_two_tc()
    # Generation-aware scoped-VMEM cap: ~56 MiB on v7x (64 MiB physical),
    # ~112 MiB on v5e/v6e (128 MiB physical).
    vmem_cap = int(vmem_phys) * 7 // 8

    w_bytes = (Cin_p * Chid_p + Chid_p * Cout_p) * cd
    bias_bytes = 8 * (Chid_p + Cout_p) * 4

    def _vmem_need(tm_, tk_, single_buf_w):
        wmul = 1 if single_buf_w else 2
        return (
            wmul * (Cin_p * tk_ + tk_ * Cout_p) * cd      # weight tiles
            + wmul * 8 * tk_ * 4                          # b1 tile (sublane pad)
            + 8 * Cout_p * 4                              # b2 (resident)
            + 2 * tm_ * Cin_p * cd                        # x tile (double buf)
            + 2 * tm_ * Cout_p * od                       # out tile (double buf)
            + tm_ * tk_ * 4 + tm_ * tk_ * cd              # f32 h + bf16 copy
            + tm_ * Cout_p * 4                            # y / accumulator f32
        )

    def _fits(tm_, tk_, single_buf_w):
        return _vmem_need(tm_, tk_, single_buf_w) <= vmem_cap * 3 // 4

    # Weight residency: keep W1/W2 (and b1/b2) grid-invariant when they fit.
    resident = _fits(16, Chid_p, True)

    # Row tile: as large as the VMEM budget allows (amortizes grid-step
    # overhead and any remaining weight streaming); multiple of 16 (bf16).
    tm_cap = _round_up(M, 16)
    tm = 16
    for cand in (1024, 768, 512, 384, 256, 192, 128, 96, 64, 48, 32, 16):
        cand = min(cand, tm_cap)
        tk_probe = Chid_p if resident else min(Chid_p, 512)
        if _fits(cand, tk_probe, resident):
            tm = cand
            break
    # Only v7x has 2 TensorCores: there, make the parallel axis an even number
    # of row tiles so both cores get balanced work; never on v5e/v6e.
    if two_tc and M > 16:
        while tm > 16 and (_round_up(M, tm) // tm) % 2 != 0:
            tm = _round_up(tm // 2, 16)
    M_p = _round_up(M, tm)
    n_row_tiles = M_p // tm

    if resident:
        tk = Chid_p
    else:
        # Stream the hidden dim: largest 128-aligned tile dividing Chid_p that
        # fits VMEM; prefer >= 256 (avoid half-filling the 256-wide MXU).
        tk = 128
        for cand in (2048, 1536, 1024, 768, 512, 384, 256, 128):
            if Chid_p % cand == 0 and _fits(tm, cand, False):
                tk = cand
                break
        # TODO: for very large Chid on v7x, an in-kernel K loop over
        # resident weight slices would avoid per-row-tile weight re-fetch.

    vmem_limit = int(min(vmem_cap,
                         max(2 * _vmem_need(tm, tk, resident), 32 * _MIB)))

    # Pad + cast x only (weights were prepared outside the call).
    x2d = x.reshape(M, Cin)
    if x2d.dtype != compute_dtype:
        x2d = x2d.astype(compute_dtype)
    if M_p != M or Cin_p != Cin:
        x2d = jnp.pad(x2d, ((0, M_p - M), (0, Cin_p - Cin)))

    cost = pl.CostEstimate(
        flops=2 * M_p * (Cin_p * Chid_p + Chid_p * Cout_p),
        transcendentals=2 * M_p * Chid_p,  # exp + approx-reciprocal per elem
        bytes_accessed=(M_p * Cin_p * cd + w_bytes + bias_bytes
                        + M_p * Cout_p * od),
    )

    if resident:
        grid = (n_row_tiles,)
        in_specs = [
            pl.BlockSpec((tm, Cin_p), lambda i: (i, 0)),
            _resident_spec((Cin_p, Chid_p), lambda i: (0, 0), Cin_p * Chid_p * cd),
            _resident_spec((1, Chid_p), lambda i: (0, 0), Chid_p * 4),
            _resident_spec((Chid_p, Cout_p), lambda i: (0, 0), Chid_p * Cout_p * cd),
            _resident_spec((1, Cout_p), lambda i: (0, 0), Cout_p * 4),
        ]
        out_specs = pl.BlockSpec((tm, Cout_p), lambda i: (i, 0))
        kernel = _mlp_kernel_resident
        scratch = []
        semantics = ("parallel",)
    else:
        grid = (n_row_tiles, Chid_p // tk)
        in_specs = [
            pl.BlockSpec((tm, Cin_p), lambda i, k: (i, 0)),
            pl.BlockSpec((Cin_p, tk), lambda i, k: (0, k)),
            pl.BlockSpec((1, tk), lambda i, k: (0, k)),
            pl.BlockSpec((tk, Cout_p), lambda i, k: (k, 0)),
            _resident_spec((1, Cout_p), lambda i, k: (0, 0), Cout_p * 4),
        ]
        out_specs = pl.BlockSpec((tm, Cout_p), lambda i, k: (i, 0))
        kernel = _mlp_kernel_streamed
        scratch = [pltpu.VMEM((tm, Cout_p), jnp.float32)]
        semantics = ("parallel", "arbitrary")

    out2d = pl.pallas_call(
        kernel,
        out_shape=jax.ShapeDtypeStruct((M_p, Cout_p), out_dtype),
        grid_spec=pltpu.PrefetchScalarGridSpec(
            num_scalar_prefetch=0,
            grid=grid,
            in_specs=in_specs,
            out_specs=out_specs,
            scratch_shapes=scratch,
        ),
        compiler_params=pltpu.CompilerParams(
            dimension_semantics=semantics,
            vmem_limit_bytes=vmem_limit,
        ),
        cost_estimate=cost,
    )(x2d, w1_p, b1_p, w2_p, b2_p)

    out = out2d[:M, :out_features]
    return out.reshape(*orig_shape[:-1], out_features)


def mlp_forward(x, w1, b1, w2, b2, compute_dtype=jnp.bfloat16):
    """Convenience drop-in: pads/casts weights per call (prefer preparing
    once via prepare_mlp_params + mlp_forward_prepared in real use)."""
    w1_p, b1_p, w2_p, b2_p, cout = prepare_mlp_params(w1, b1, w2, b2,
                                                      compute_dtype)
    return mlp_forward_prepared(x, w1_p, b1_p, w2_p, b2_p, out_features=cout)


def init_mlp_params(key, in_features, hidden_features, out_features,
                    dtype=jnp.float32):
    """Deterministic init mimicking nn.Linear default (uniform +-1/sqrt(fan_in)).
    Weights are stored already transposed to (in, out) for the kernel."""
    k1, k2, k3, k4 = jax.random.split(key, 4)
    lim1 = 1.0 / math.sqrt(in_features)
    lim2 = 1.0 / math.sqrt(hidden_features)
    w1 = jax.random.uniform(k1, (in_features, hidden_features), dtype, -lim1, lim1)
    b1 = jax.random.uniform(k2, (hidden_features,), dtype, -lim1, lim1)
    w2 = jax.random.uniform(k3, (hidden_features, out_features), dtype, -lim2, lim2)
    b2 = jax.random.uniform(k4, (out_features,), dtype, -lim2, lim2)
    return w1, b1, w2, b2


if __name__ == "__main__":
    # Small Swin-like shapes: batch=2, tokens=64 (8x8 window), C=32, hidden=4*C.
    B, N, Cin = 2, 64, 32
    Chid, Cout = 4 * Cin, Cin

    key = jax.random.PRNGKey(0)
    kx, kp = jax.random.split(key)
    x = jax.random.normal(kx, (B, N, Cin), dtype=jnp.float32)
    w1, b1, w2, b2 = init_mlp_params(kp, Cin, Chid, Cout)

    # Pad/cast weights once, outside the per-call path.
    w1_p, b1_p, w2_p, b2_p, out_features = prepare_mlp_params(w1, b1, w2, b2)
    y = mlp_forward_prepared(x, w1_p, b1_p, w2_p, b2_p,
                             out_features=out_features)
    jax.block_until_ready(y)

    # Reference (plain JAX f32, exact-erf GELU, dropout p=0 -> identity).
    # Kernel computes matmuls in bf16 with f32 accumulation -> loose tolerance.
    ref = jax.nn.gelu(x @ w1 + b1, approximate=False) @ w2 + b2
    assert y.shape == (B, N, Cout)
    err = float(jnp.max(jnp.abs(y - ref)))
    assert jnp.allclose(y, ref, atol=3e-2, rtol=3e-2), err

    print("KERNEL_OK")
</pallas_src>

<mosaic_0001>
module attributes {stable_mosaic.version = 11 : i64} {
  func.func @_mlp_kernel_resident(%arg0: i32, %arg1: memref<128x128xbf16, #tpu.memory_space<vmem>>, %arg2: memref<128x128xbf16, #tpu.memory_space<vmem>>, %arg3: memref<1x128xf32, #tpu.memory_space<vmem>>, %arg4: memref<128x128xbf16, #tpu.memory_space<vmem>>, %arg5: memref<1x128xf32, #tpu.memory_space<vmem>>, %arg6: memref<128x128xf32, #tpu.memory_space<vmem>>) attributes {dimension_semantics = [#tpu.dimension_semantics<parallel>], iteration_bounds = array<i64: 1>, scalar_prefetch = 0 : i64, scratch_operands = 0 : i64, tpu.core_type = #tpu.core_type<tc>, window_params = [{transform_indices = @transform_0, window_bounds = array<i64: 128, 128>}, {pipeline_mode = #tpu.pipeline_mode<synchronous>, transform_indices = @transform_1, window_bounds = array<i64: 128, 128>}, {pipeline_mode = #tpu.pipeline_mode<synchronous>, transform_indices = @transform_2, window_bounds = array<i64: 1, 128>}, {pipeline_mode = #tpu.pipeline_mode<synchronous>, transform_indices = @transform_3, window_bounds = array<i64: 128, 128>}, {pipeline_mode = #tpu.pipeline_mode<synchronous>, transform_indices = @transform_4, window_bounds = array<i64: 1, 128>}, {transform_indices = @transform_5, window_bounds = array<i64: 128, 128>}]} {
    %c0 = arith.constant 0 : index
    %c0_0 = arith.constant 0 : index
    %0 = vector.load %arg1[%c0, %c0_0] : memref<128x128xbf16, #tpu.memory_space<vmem>>, vector<128x128xbf16>
    %c0_1 = arith.constant 0 : index
    %c0_2 = arith.constant 0 : index
    %1 = vector.load %arg2[%c0_1, %c0_2] : memref<128x128xbf16, #tpu.memory_space<vmem>>, vector<128x128xbf16>
    %cst = arith.constant dense<0.000000e+00> : vector<128x128xf32>
    %2 = tpu.matmul %0, %1, %cst {dimension_numbers = #tpu.dot_dimension_numbers<[1], [0], [0], [1], [0, 0, 1, 1], [], []>} : vector<128x128xbf16>, vector<128x128xbf16>, vector<128x128xf32> -> vector<128x128xf32>
    %c0_3 = arith.constant 0 : index
    %c0_4 = arith.constant 0 : index
    %3 = vector.load %arg3[%c0_3, %c0_4] : memref<1x128xf32, #tpu.memory_space<vmem>>, vector<1x128xf32>
    %4 = vector.broadcast %3 : vector<1x128xf32> to vector<128x128xf32>
    %5 = arith.addf %2, %4 : vector<128x128xf32>
    %cst_5 = arith.constant 5.000000e-01 : f32
    %6 = vector.broadcast %cst_5 : f32 to vector<128x128xf32>
    %7 = arith.mulf %6, %5 : vector<128x128xf32>
    %cst_6 = arith.constant 0.707106769 : f32
    %8 = vector.broadcast %cst_6 : f32 to vector<128x128xf32>
    %9 = arith.mulf %5, %8 : vector<128x128xf32>
    %cst_7 = arith.constant 0.000000e+00 : f32
    %10 = vector.broadcast %cst_7 : f32 to vector<128x128xf32>
    %11 = arith.cmpf oge, %9, %10 : vector<128x128xf32>
    %cst_8 = arith.constant 1.000000e+00 : f32
    %cst_9 = arith.constant -1.000000e+00 : f32
    %12 = vector.broadcast %cst_8 : f32 to vector<128x128xf32>
    %13 = vector.broadcast %cst_9 : f32 to vector<128x128xf32>
    %14 = arith.select %11, %12, %13 : vector<128x128xi1>, vector<128x128xf32>
    %15 = math.absf %9 : vector<128x128xf32>
    %cst_10 = arith.constant 0.327591091 : f32
    %16 = vector.broadcast %cst_10 : f32 to vector<128x128xf32>
    %17 = arith.mulf %16, %15 : vector<128x128xf32>
    %cst_11 = arith.constant 1.000000e+00 : f32
    %18 = vector.broadcast %cst_11 : f32 to vector<128x128xf32>
    %19 = arith.addf %18, %17 : vector<128x128xf32>
    %20 = tpu.reciprocal %19 {approx = true} : vector<128x128xf32> -> vector<128x128xf32>
    %cst_12 = arith.constant 1.06140542 : f32
    %21 = vector.broadcast %cst_12 : f32 to vector<128x128xf32>
    %22 = arith.mulf %21, %20 : vector<128x128xf32>
    %cst_13 = arith.constant -1.45315206 : f32
    %23 = vector.broadcast %cst_13 : f32 to vector<128x128xf32>
    %24 = arith.addf %22, %23 : vector<128x128xf32>
    %25 = arith.mulf %24, %20 : vector<128x128xf32>
    %cst_14 = arith.constant 1.42141378 : f32
    %26 = vector.broadcast %cst_14 : f32 to vector<128x128xf32>
    %27 = arith.addf %25, %26 : vector<128x128xf32>
    %28 = arith.mulf %27, %20 : vector<128x128xf32>
    %cst_15 = arith.constant -0.284496725 : f32
    %29 = vector.broadcast %cst_15 : f32 to vector<128x128xf32>
    %30 = arith.addf %28, %29 : vector<128x128xf32>
    %31 = arith.mulf %30, %20 : vector<128x128xf32>
    %cst_16 = arith.constant 0.254829586 : f32
    %32 = vector.broadcast %cst_16 : f32 to vector<128x128xf32>
    %33 = arith.addf %31, %32 : vector<128x128xf32>
    %34 = arith.mulf %33, %20 : vector<128x128xf32>
    %cst_17 = arith.constant 0.000000e+00 : f32
    %35 = vector.broadcast %cst_17 : f32 to vector<128x128xf32>
    %36 = arith.subf %35, %15 : vector<128x128xf32>
    %37 = arith.mulf %36, %15 : vector<128x128xf32>
    %38 = math.exp %37 : vector<128x128xf32>
    %39 = arith.mulf %34, %38 : vector<128x128xf32>
    %cst_18 = arith.constant 1.000000e+00 : f32
    %40 = vector.broadcast %cst_18 : f32 to vector<128x128xf32>
    %41 = arith.subf %40, %39 : vector<128x128xf32>
    %42 = arith.mulf %14, %41 : vector<128x128xf32>
    %cst_19 = arith.constant 1.000000e+00 : f32
    %43 = vector.broadcast %cst_19 : f32 to vector<128x128xf32>
    %44 = arith.addf %43, %42 : vector<128x128xf32>
    %45 = arith.mulf %7, %44 : vector<128x128xf32>
    %46 = arith.truncf %45 : vector<128x128xf32> to vector<128x128xbf16>
    %c0_20 = arith.constant 0 : index
    %c0_21 = arith.constant 0 : index
    %47 = vector.load %arg4[%c0_20, %c0_21] : memref<128x128xbf16, #tpu.memory_space<vmem>>, vector<128x128xbf16>
    %cst_22 = arith.constant dense<0.000000e+00> : vector<128x128xf32>
    %48 = tpu.matmul %46, %47, %cst_22 {dimension_numbers = #tpu.dot_dimension_numbers<[1], [0], [0], [1], [0, 0, 1, 1], [], []>} : vector<128x128xbf16>, vector<128x128xbf16>, vector<128x128xf32> -> vector<128x128xf32>
    %c0_23 = arith.constant 0 : index
    %c0_24 = arith.constant 0 : index
    %49 = vector.load %arg5[%c0_23, %c0_24] : memref<1x128xf32, #tpu.memory_space<vmem>>, vector<1x128xf32>
    %50 = vector.broadcast %49 : vector<1x128xf32> to vector<128x128xf32>
    %51 = arith.addf %48, %50 : vector<128x128xf32>
    %c0_25 = arith.constant 0 : index
    %c0_26 = arith.constant 0 : index
    %52 = vector.load %arg6[%c0_25, %c0_26] : memref<128x128xf32, #tpu.memory_space<vmem>>, vector<128x128xf32>
    tpu.vector_store %arg6[%c0_25, %c0_26], %51 {strides = array<i32>} : memref<128x128xf32, #tpu.memory_space<vmem>>, vector<128x128xf32>,
    return
  }
  func.func @transform_0(%arg0: i32) -> (i32, i32) {
    %c0_i32 = arith.constant 0 : i32
    %c0_i32_0 = arith.constant 0 : i32
    return %arg0, %c0_i32 : i32, i32
  }
  func.func @transform_1(%arg0: i32) -> (i32, i32) {
    %c0_i32 = arith.constant 0 : i32
    %c0_i32_0 = arith.constant 0 : i32
    %c0_i32_1 = arith.constant 0 : i32
    return %c0_i32, %c0_i32_0 : i32, i32
  }
  func.func @transform_2(%arg0: i32) -> (i32, i32) {
    %c0_i32 = arith.constant 0 : i32
    %c0_i32_0 = arith.constant 0 : i32
    %c0_i32_1 = arith.constant 0 : i32
    return %c0_i32, %c0_i32_0 : i32, i32
  }
  func.func @transform_3(%arg0: i32) -> (i32, i32) {
    %c0_i32 = arith.constant 0 : i32
    %c0_i32_0 = arith.constant 0 : i32
    %c0_i32_1 = arith.constant 0 : i32
    return %c0_i32, %c0_i32_0 : i32, i32
  }
  func.func @transform_4(%arg0: i32) -> (i32, i32) {
    %c0_i32 = arith.constant 0 : i32
    %c0_i32_0 = arith.constant 0 : i32
    %c0_i32_1 = arith.constant 0 : i32
    return %c0_i32, %c0_i32_0 : i32, i32
  }
  func.func @transform_5(%arg0: i32) -> (i32, i32) {
    %c0_i32 = arith.constant 0 : i32
    %c0_i32_0 = arith.constant 0 : i32
    return %arg0, %c0_i32 : i32, i32
  }
}

</mosaic_0001>

<llo_original>
// kernel: mlp_forward_prepared.1
$region0: #{mlp_forward_prepared.1}
  #allocation0 [shape = 'u32[]', space=smem, size = 0x4, offset = 0x4, fixed_abs, tag = 'smem constant byte address 0x4 - core index']
  #allocation1 [shape = 'u32[144,128]{1,0:T(1,128)}', space=vmem, size = 0x12000, scoped, tag = 'internal scratch']
  %s0 = inlined_call_operand.vmem [shape: bf16[128,128], index: 0, kind: input, shape index: {}]
  %s1 = inlined_call_operand.vmem [shape: bf16[128,128], index: 1, kind: input, shape index: {}]
  %s2 = inlined_call_operand.vmem [shape: f32[1,128], index: 2, kind: input, shape index: {}]
  %s3 = inlined_call_operand.vmem [shape: bf16[128,128], index: 3, kind: input, shape index: {}]
  %s4 = inlined_call_operand.vmem [shape: f32[1,128], index: 4, kind: input, shape index: {}]
  %s5 = inlined_call_operand.vmem [shape: f32[128,128], index: 5, kind: output, shape index: {}]
  %s6 = sld [smem:[#allocation0]]
  $region30: #{mlp_forward_prepared.1} parent=0
    _
  %s8 = ssub.s32 1, %s6
  %s9 = scalar_select 0, %s8, %s6
  // Predicated region
  $region2: #{mlp_forward_prepared.1} parent=0 // pred_check
    _
  $region3: #{mlp_forward_prepared.1} parent=0 // pred_check_branch
    %11 = sbr.rel (0) target = $region5
  $region4: #{mlp_forward_prepared.1} parent=0 // pred_region
    _
  $region5: #{mlp_forward_prepared.1} parent=0 // pred_fallthru
    _
  // Predicated region
  $region6: #{mlp_forward_prepared.1} parent=0 // pred_check
    _
  $region7: #{mlp_forward_prepared.1} parent=0 // pred_check_branch
    %13 = sbr.rel (0) target = $region9
  $region8: #{mlp_forward_prepared.1} parent=0 // pred_region
    _
  $region9: #{mlp_forward_prepared.1} parent=0 // pred_fallthru
    _
  // Predicated region
  $region10: #{mlp_forward_prepared.1} parent=0 // pred_check
    _
  $region11: #{mlp_forward_prepared.1} parent=0 // pred_check_branch
    %15 = sbr.rel (0) target = $region13
  $region12: #{mlp_forward_prepared.1} parent=0 // pred_region
    _
  $region13: #{mlp_forward_prepared.1} parent=0 // pred_fallthru
    _
  // Predicated region
  $region14: #{mlp_forward_prepared.1} parent=0 // pred_check
    _
  $region15: #{mlp_forward_prepared.1} parent=0 // pred_check_branch
    %17 = sbr.rel (0) target = $region17
  $region16: #{mlp_forward_prepared.1} parent=0 // pred_region
    _
  $region17: #{mlp_forward_prepared.1} parent=0 // pred_fallthru
    _
  // Predicated region
  $region18: #{mlp_forward_prepared.1} parent=0 // pred_check
    _
  $region19: #{mlp_forward_prepared.1} parent=0 // pred_check_branch
    %19 = sbr.rel (0) target = $region21
  $region20: #{mlp_forward_prepared.1} parent=0 // pred_region
    _
  $region21: #{mlp_forward_prepared.1} parent=0 // pred_fallthru
    _
  %v21 = vld [vmem:[%s0] sm:$0xf]
  %v22 = vld [vmem:[%s0 + $0x4] sm:$0xf]
  %v23 = vld [vmem:[%s0 + $0x8] sm:$0xf]
  %v24 = vld [vmem:[%s0 + $0xc] sm:$0xf]
  %v25 = vld [vmem:[%s0 + $0x10] sm:$0xf]
  %v26 = vld [vmem:[%s0 + $0x14] sm:$0xf]
  %v27 = vld [vmem:[%s0 + $0x18] sm:$0xf]
  %v28 = vld [vmem:[%s0 + $0x1c] sm:$0xf]
  %v29 = vld [vmem:[%s0 + $0x20] sm:$0xf]
  %v30 = vld [vmem:[%s0 + $0x24] sm:$0xf]
  %v31 = vld [vmem:[%s0 + $0x28] sm:$0xf]
  %v32 = vld [vmem:[%s0 + $0x2c] sm:$0xf]
  %v33 = vld [vmem:[%s0 + $0x30] sm:$0xf]
  %v34 = vld [vmem:[%s0 + $0x34] sm:$0xf]
  %v35 = vld [vmem:[%s0 + $0x38] sm:$0xf]
  %v36 = vld [vmem:[%s0 + $0x3c] sm:$0xf]
  %v37 = vld [vmem:[%s1] sm:$0xf]
  %v38 = vld [vmem:[%s1 + $0x4] sm:$0xf]
  %v39 = vld [vmem:[%s1 + $0x8] sm:$0xf]
  %v40 = vld [vmem:[%s1 + $0xc] sm:$0xf]
  %v41 = vld [vmem:[%s1 + $0x10] sm:$0xf]
  %v42 = vld [vmem:[%s1 + $0x14] sm:$0xf]
  %v43 = vld [vmem:[%s1 + $0x18] sm:$0xf]
  %v44 = vld [vmem:[%s1 + $0x1c] sm:$0xf]
  %v45 = vld [vmem:[%s1 + $0x20] sm:$0xf]
  %v46 = vld [vmem:[%s1 + $0x24] sm:$0xf]
  %v47 = vld [vmem:[%s1 + $0x28] sm:$0xf]
  %v48 = vld [vmem:[%s1 + $0x2c] sm:$0xf]
  %v49 = vld [vmem:[%s1 + $0x30] sm:$0xf]
  %v50 = vld [vmem:[%s1 + $0x34] sm:$0xf]
  %v51 = vld [vmem:[%s1 + $0x38] sm:$0xf]
  %v52 = vld [vmem:[%s1 + $0x3c] sm:$0xf]
  %v53 = vld [vmem:[%s2] sm:$0x1]
  %v55 = vlaneseq
  %v56 = vshrl.u32 %v55, 7
  %v57 = vsub.s32 0, %v56
  %v58 = vrot.slane %v53, %v57
  %v76 = vunpack.c.l.b16 %v21
  %v77 = vunpack.c.l.b16 %v22
  %v78 = vunpack.c.l.b16 %v23
  %v79 = vunpack.c.l.b16 %v24
  %v80 = vunpack.c.l.b16 %v25
  %v81 = vunpack.c.l.b16 %v26
  %v82 = vunpack.c.l.b16 %v27
  %v83 = vunpack.c.l.b16 %v28
  %v84 = vunpack.c.l.b16 %v29
  %v85 = vunpack.c.l.b16 %v30
  %v86 = vunpack.c.l.b16 %v31
  %v87 = vunpack.c.l.b16 %v32
  %v88 = vunpack.c.l.b16 %v33
  %v89 = vunpack.c.l.b16 %v34
  %v90 = vunpack.c.l.b16 %v35
  %v91 = vunpack.c.l.b16 %v36
  %v92 = vpack.c.b16 %v77, %v76
  %v93 = vpack.c.b16 %v79, %v78
  %v94 = vpack.c.b16 %v81, %v80
  %v95 = vpack.c.b16 %v83, %v82
  %v96 = vpack.c.b16 %v85, %v84
  %v97 = vpack.c.b16 %v87, %v86
  %v98 = vpack.c.b16 %v89, %v88
  %v99 = vpack.c.b16 %v91, %v90
  %v124 = vunpack.c.l.b16 %v37
  %v125 = vunpack.c.l.b16 %v38
  %v126 = vunpack.c.l.b16 %v39
  %v127 = vunpack.c.l.b16 %v40
  %v128 = vunpack.c.l.b16 %v41
  %v129 = vunpack.c.l.b16 %v42
  %v130 = vunpack.c.l.b16 %v43
  %v131 = vunpack.c.l.b16 %v44
  %v132 = vunpack.c.l.b16 %v45
  %v133 = vunpack.c.l.b16 %v46
  %v134 = vunpack.c.l.b16 %v47
  %v135 = vunpack.c.l.b16 %v48
  %v136 = vunpack.c.l.b16 %v49
  %v137 = vunpack.c.l.b16 %v50
  %v138 = vunpack.c.l.b16 %v51
  %v139 = vunpack.c.l.b16 %v52
  %v140 = vpack.c.b16 %v125, %v124
  %v141 = vpack.c.b16 %v127, %v126
  %v142 = vpack.c.b16 %v129, %v128
  %v143 = vpack.c.b16 %v131, %v130
  %v144 = vpack.c.b16 %v133, %v132
  %v145 = vpack.c.b16 %v135, %v134
  %v146 = vpack.c.b16 %v137, %v136
  %v147 = vpack.c.b16 %v139, %v138
  %156 = vmatprep.subr.bf16.mxu0 0
  %157 = vmatpush1.bf16.msra.mxu0 %v147
  %158 = vmatprep.subr.bf16.mxu0 0
  %159 = vmatpush1.bf16.msra.mxu0 %v146
  %160 = vmatprep.subr.bf16.mxu0 0
  %161 = vmatpush1.bf16.msra.mxu0 %v145
  %162 = vmatprep.subr.bf16.mxu0 0
  %163 = vmatpush1.bf16.msra.mxu0 %v144
  %164 = vmatprep.subr.bf16.mxu0 0
  %165 = vmatpush1.bf16.msra.mxu0 %v143
  %166 = vmatprep.subr.bf16.mxu0 0
  %167 = vmatpush1.bf16.msra.mxu0 %v142
  %168 = vmatprep.subr.bf16.mxu0 0
  %169 = vmatpush1.bf16.msra.mxu0 %v141
  %170 = vmatprep.subr.bf16.mxu0 0
  %171 = vmatpush1.bf16.msra.mxu0 %v140
  %172 = vmatprep.subr.bf16.mxu0 0
  %173 = vmatpush2.bf16.msra.mxu0 0
  %174 = vmatprep.subr.bf16.mxu0 0
  %175 = vmatpush2.bf16.msra.mxu0 0
  %176 = vmatprep.subr.bf16.mxu0 0
  %177 = vmatpush2.bf16.msra.mxu0 0
  %178 = vmatprep.subr.bf16.mxu0 0
  %179 = vmatpush2.bf16.msra.mxu0 0
  %180 = vmatprep.subr.bf16.mxu0 0
  %181 = vmatpush2.bf16.msra.mxu0 0
  %182 = vmatprep.subr.bf16.mxu0 0
  %183 = vmatpush2.bf16.msra.mxu0 0
  %184 = vmatprep.subr.bf16.mxu0 0
  %185 = vmatpush2.bf16.msra.mxu0 0
  %186 = vmatprep.subr.bf16.mxu0 0
  %187 = vmatpush2.bf16.msra.mxu0 0
  %188 = vmatprep.mubr.bf16.mxu0 0
  %189 = vmatmul.mubr.bf16.gmra.mxu0 %v92
  %v190 = vpop.f32.mrf.mxu0
  %v191 = vadd.f32 %v58, %v190
  %v192 = vpop.f32.mrf.mxu0
  %v193 = vpop.f32.mrf.mxu0
  %v194 = vadd.f32 %v58, %v193
  %v195 = vpop.f32.mrf.mxu0
  %196 = vmatprep.mubr.bf16.mxu0 0
  %197 = vmatmul.mubr.bf16.gmra.mxu0 %v93
  %v198 = vpop.f32.mrf.mxu0
  %v199 = vadd.f32 %v58, %v198
  %v200 = vpop.f32.mrf.mxu0
  %v201 = vpop.f32.mrf.mxu0
  %v202 = vadd.f32 %v58, %v201
  %v203 = vpop.f32.mrf.mxu0
  %204 = vmatprep.mubr.bf16.mxu0 0
  %205 = vmatmul.mubr.bf16.gmra.mxu0 %v94
  %v206 = vpop.f32.mrf.mxu0
  %v207 = vadd.f32 %v58, %v206
  %v208 = vpop.f32.mrf.mxu0
  %v209 = vpop.f32.mrf.mxu0
  %v210 = vadd.f32 %v58, %v209
  %v211 = vpop.f32.mrf.mxu0
  %212 = vmatprep.mubr.bf16.mxu0 0
  %213 = vmatmul.mubr.bf16.gmra.mxu0 %v95
  %v214 = vpop.f32.mrf.mxu0
  %v215 = vadd.f32 %v58, %v214
  %v216 = vpop.f32.mrf.mxu0
  %v217 = vpop.f32.mrf.mxu0
  %v218 = vadd.f32 %v58, %v217
  %v219 = vpop.f32.mrf.mxu0
  %220 = vmatprep.mubr.bf16.mxu0 0
  %221 = vmatmul.mubr.bf16.gmra.mxu0 %v96
  %v222 = vpop.f32.mrf.mxu0
  %v223 = vadd.f32 %v58, %v222
  %v224 = vpop.f32.mrf.mxu0
  %v225 = vpop.f32.mrf.mxu0
  %v226 = vadd.f32 %v58, %v225
  %v227 = vpop.f32.mrf.mxu0
  %228 = vmatprep.mubr.bf16.mxu0 0
  %229 = vmatmul.mubr.bf16.gmra.mxu0 %v97
  %v230 = vpop.f32.mrf.mxu0
  %v231 = vadd.f32 %v58, %v230
  %v232 = vpop.f32.mrf.mxu0
  %v233 = vpop.f32.mrf.mxu0
  %v234 = vadd.f32 %v58, %v233
  %v235 = vpop.f32.mrf.mxu0
  %236 = vmatprep.mubr.bf16.mxu0 0
  %237 = vmatmul.mubr.bf16.gmra.mxu0 %v98
  %v238 = vpop.f32.mrf.mxu0
  %v239 = vadd.f32 %v58, %v238
  %v240 = vpop.f32.mrf.mxu0
  %v241 = vpop.f32.mrf.mxu0
  %v242 = vadd.f32 %v58, %v241
  %v243 = vpop.f32.mrf.mxu0
  %244 = vmatprep.mubr.bf16.mxu0 0
  %245 = vmatmul.mubr.bf16.gmra.mxu0 %v99
  %v246 = vpop.f32.mrf.mxu0
  %v247 = vadd.f32 %v58, %v246
  %v248 = vpop.f32.mrf.mxu0
  %v249 = vpop.f32.mrf.mxu0
  %v250 = vadd.f32 %v58, %v249
  %v251 = vpop.f32.mrf.mxu0
  %252 = vdwg.mxu0
  %v253 = vmul.f32 %v191, 0.5
  %v254 = vmul.f32 %v194, 0.5
  %v255 = vmul.f32 %v199, 0.5
  %v256 = vmul.f32 %v202, 0.5
  %v257 = vmul.f32 %v207, 0.5
  %v258 = vmul.f32 %v210, 0.5
  %v259 = vmul.f32 %v215, 0.5
  %v260 = vmul.f32 %v218, 0.5
  %v261 = vmul.f32 %v223, 0.5
  %v262 = vmul.f32 %v226, 0.5
  %v263 = vmul.f32 %v231, 0.5
  %v264 = vmul.f32 %v234, 0.5
  %v265 = vmul.f32 %v239, 0.5
  %v266 = vmul.f32 %v242, 0.5
  %v267 = vmul.f32 %v247, 0.5
  %v268 = vmul.f32 %v250, 0.5
  %v269 = vmul.f32 %v191, 0.70710677
  %v270 = vmul.f32 %v194, 0.70710677
  %v271 = vmul.f32 %v199, 0.70710677
  %v272 = vmul.f32 %v202, 0.70710677
  %v273 = vmul.f32 %v207, 0.70710677
  %v274 = vmul.f32 %v210, 0.70710677
  %v275 = vmul.f32 %v215, 0.70710677
  %v276 = vmul.f32 %v218, 0.70710677
  %v277 = vmul.f32 %v223, 0.70710677
  %v278 = vmul.f32 %v226, 0.70710677
  %v279 = vmul.f32 %v231, 0.70710677
  %v280 = vmul.f32 %v234, 0.70710677
  %v281 = vmul.f32 %v239, 0.70710677
  %v282 = vmul.f32 %v242, 0.70710677
  %v283 = vmul.f32 %v247, 0.70710677
  %v284 = vmul.f32 %v250, 0.70710677
  %vm285 = vcmp.ge.f32.partialorder %v269, 0.0
  %vm286 = vcmp.ge.f32.partialorder %v270, 0.0
  %vm287 = vcmp.ge.f32.partialorder %v271, 0.0
  %vm288 = vcmp.ge.f32.partialorder %v272, 0.0
  %vm289 = vcmp.ge.f32.partialorder %v273, 0.0
  %vm290 = vcmp.ge.f32.partialorder %v274, 0.0
  %vm291 = vcmp.ge.f32.partialorder %v275, 0.0
  %vm292 = vcmp.ge.f32.partialorder %v276, 0.0
  %vm293 = vcmp.ge.f32.partialorder %v277, 0.0
  %vm294 = vcmp.ge.f32.partialorder %v278, 0.0
  %vm295 = vcmp.ge.f32.partialorder %v279, 0.0
  %vm296 = vcmp.ge.f32.partialorder %v280, 0.0
  %vm297 = vcmp.ge.f32.partialorder %v281, 0.0
  %vm298 = vcmp.ge.f32.partialorder %v282, 0.0
  %vm299 = vcmp.ge.f32.partialorder %v283, 0.0
  %vm300 = vcmp.ge.f32.partialorder %v284, 0.0
  %v301 = vsel %vm285, 1.0, -1.0
  %v302 = vsel %vm286, 1.0, -1.0
  %v303 = vsel %vm287, 1.0, -1.0
  %v304 = vsel %vm288, 1.0, -1.0
  %v305 = vsel %vm289, 1.0, -1.0
  %v306 = vsel %vm290, 1.0, -1.0
  %v307 = vsel %vm291, 1.0, -1.0
  %v308 = vsel %vm292, 1.0, -1.0
  %v309 = vsel %vm293, 1.0, -1.0
  %v310 = vsel %vm294, 1.0, -1.0
  %v311 = vsel %vm295, 1.0, -1.0
  %v312 = vsel %vm296, 1.0, -1.0
  %v313 = vsel %vm297, 1.0, -1.0
  %v314 = vsel %vm298, 1.0, -1.0
  %v315 = vsel %vm299, 1.0, -1.0
  %v316 = vsel %vm300, 1.0, -1.0
  %v317 = vand.u32 2147483647, %v269
  %v318 = vand.u32 2147483647, %v270
  %v319 = vand.u32 2147483647, %v271
  %v320 = vand.u32 2147483647, %v272
  %v321 = vand.u32 2147483647, %v273
  %v322 = vand.u32 2147483647, %v274
  %v323 = vand.u32 2147483647, %v275
  %v324 = vand.u32 2147483647, %v276
  %v325 = vand.u32 2147483647, %v277
  %v326 = vand.u32 2147483647, %v278
  %v327 = vand.u32 2147483647, %v279
  %v328 = vand.u32 2147483647, %v280
  %v329 = vand.u32 2147483647, %v281
  %v330 = vand.u32 2147483647, %v282
  %v331 = vand.u32 2147483647, %v283
  %v332 = vand.u32 2147483647, %v284
  %v333 = vmul.f32 %v317, 0.3275911
  %v334 = vmul.f32 %v318, 0.3275911
  %v335 = vmul.f32 %v319, 0.3275911
  %v336 = vmul.f32 %v320, 0.3275911
  %v337 = vmul.f32 %v321, 0.3275911
  %v338 = vmul.f32 %v322, 0.3275911
  %v339 = vmul.f32 %v323, 0.3275911
  %v340 = vmul.f32 %v324, 0.3275911
  %v341 = vmul.f32 %v325, 0.3275911
  %v342 = vmul.f32 %v326, 0.3275911
  %v343 = vmul.f32 %v327, 0.3275911
  %v344 = vmul.f32 %v328, 0.3275911
  %v345 = vmul.f32 %v329, 0.3275911
  %v346 = vmul.f32 %v330, 0.3275911
  %v347 = vmul.f32 %v331, 0.3275911
  %v348 = vmul.f32 %v332, 0.3275911
  %v349 = vadd.f32 %v333, 1.0
  %v350 = vadd.f32 %v334, 1.0
  %v351 = vadd.f32 %v335, 1.0
  %v352 = vadd.f32 %v336, 1.0
  %v353 = vadd.f32 %v337, 1.0
  %v354 = vadd.f32 %v338, 1.0
  %v355 = vadd.f32 %v339, 1.0
  %v356 = vadd.f32 %v340, 1.0
  %v357 = vadd.f32 %v341, 1.0
  %v358 = vadd.f32 %v342, 1.0
  %v359 = vadd.f32 %v343, 1.0
  %v360 = vadd.f32 %v344, 1.0
  %v361 = vadd.f32 %v345, 1.0
  %v362 = vadd.f32 %v346, 1.0
  %v363 = vadd.f32 %v347, 1.0
  %v364 = vadd.f32 %v348, 1.0
  %v365 = vrcp.pop %v349
  %v366 = vrcp.pop %v350
  %v367 = vrcp.pop %v351
  %v368 = vrcp.pop %v352
  %v369 = vrcp.pop %v353
  %v370 = vrcp.pop %v354
  %v371 = vrcp.pop %v355
  %v372 = vrcp.pop %v356
  %v373 = vrcp.pop %v357
  %v374 = vrcp.pop %v358
  %v375 = vrcp.pop %v359
  %v376 = vrcp.pop %v360
  %v377 = vrcp.pop %v361
  %v378 = vrcp.pop %v362
  %v379 = vrcp.pop %v363
  %v380 = vrcp.pop %v364
  %v381 = vmul.f32 %v365, 1.0614054
  %v382 = vmul.f32 %v366, 1.0614054
  %v383 = vmul.f32 %v367, 1.0614054
  %v384 = vmul.f32 %v368, 1.0614054
  %v385 = vmul.f32 %v369, 1.0614054
  %v386 = vmul.f32 %v370, 1.0614054
  %v387 = vmul.f32 %v371, 1.0614054
  %v388 = vmul.f32 %v372, 1.0614054
  %v389 = vmul.f32 %v373, 1.0614054
  %v390 = vmul.f32 %v374, 1.0614054
  %v391 = vmul.f32 %v375, 1.0614054
  %v392 = vmul.f32 %v376, 1.0614054
  %v393 = vmul.f32 %v377, 1.0614054
  %v394 = vmul.f32 %v378, 1.0614054
  %v395 = vmul.f32 %v379, 1.0614054
  %v396 = vmul.f32 %v380, 1.0614054
  %v397 = vadd.f32 %v381, -1.4531521
  %v398 = vadd.f32 %v382, -1.4531521
  %v399 = vadd.f32 %v383, -1.4531521
  %v400 = vadd.f32 %v384, -1.4531521
  %v401 = vadd.f32 %v385, -1.4531521
  %v402 = vadd.f32 %v386, -1.4531521
  %v403 = vadd.f32 %v387, -1.4531521
  %v404 = vadd.f32 %v388, -1.4531521
  %v405 = vadd.f32 %v389, -1.4531521
  %v406 = vadd.f32 %v390, -1.4531521
  %v407 = vadd.f32 %v391, -1.4531521
  %v408 = vadd.f32 %v392, -1.4531521
  %v409 = vadd.f32 %v393, -1.4531521
  %v410 = vadd.f32 %v394, -1.4531521
  %v411 = vadd.f32 %v395, -1.4531521
  %v412 = vadd.f32 %v396, -1.4531521
  %v413 = vmul.f32 %v397, %v365
  %v414 = vmul.f32 %v398, %v366
  %v415 = vmul.f32 %v399, %v367
  %v416 = vmul.f32 %v400, %v368
  %v417 = vmul.f32 %v401, %v369
  %v418 = vmul.f32 %v402, %v370
  %v419 = vmul.f32 %v403, %v371
  %v420 = vmul.f32 %v404, %v372
  %v421 = vmul.f32 %v405, %v373
  %v422 = vmul.f32 %v406, %v374
  %v423 = vmul.f32 %v407, %v375
  %v424 = vmul.f32 %v408, %v376
  %v425 = vmul.f32 %v409, %v377
  %v426 = vmul.f32 %v410, %v378
  %v427 = vmul.f32 %v411, %v379
  %v428 = vmul.f32 %v412, %v380
  %v429 = vadd.f32 %v413, 1.4214138
  %v430 = vadd.f32 %v414, 1.4214138
  %v431 = vadd.f32 %v415, 1.4214138
  %v432 = vadd.f32 %v416, 1.4214138
  %v433 = vadd.f32 %v417, 1.4214138
  %v434 = vadd.f32 %v418, 1.4214138
  %v435 = vadd.f32 %v419, 1.4214138
  %v436 = vadd.f32 %v420, 1.4214138
  %v437 = vadd.f32 %v421, 1.4214138
  %v438 = vadd.f32 %v422, 1.4214138
  %v439 = vadd.f32 %v423, 1.4214138
  %v440 = vadd.f32 %v424, 1.4214138
  %v441 = vadd.f32 %v425, 1.4214138
  %v442 = vadd.f32 %v426, 1.4214138
  %v443 = vadd.f32 %v427, 1.4214138
  %v444 = vadd.f32 %v428, 1.4214138
  %v445 = vmul.f32 %v429, %v365
  %v446 = vmul.f32 %v430, %v366
  %v447 = vmul.f32 %v431, %v367
  %v448 = vmul.f32 %v432, %v368
  %v449 = vmul.f32 %v433, %v369
  %v450 = vmul.f32 %v434, %v370
  %v451 = vmul.f32 %v435, %v371
  %v452 = vmul.f32 %v436, %v372
  %v453 = vmul.f32 %v437, %v373
  %v454 = vmul.f32 %v438, %v374
  %v455 = vmul.f32 %v439, %v375
  %v456 = vmul.f32 %v440, %v376
  %v457 = vmul.f32 %v441, %v377
  %v458 = vmul.f32 %v442, %v378
  %v459 = vmul.f32 %v443, %v379
  %v460 = vmul.f32 %v444, %v380
  %v461 = vadd.f32 %v445, -0.28449672
  %v462 = vadd.f32 %v446, -0.28449672
  %v463 = vadd.f32 %v447, -0.28449672
  %v464 = vadd.f32 %v448, -0.28449672
  %v465 = vadd.f32 %v449, -0.28449672
  %v466 = vadd.f32 %v450, -0.28449672
  %v467 = vadd.f32 %v451, -0.28449672
  %v468 = vadd.f32 %v452, -0.28449672
  %v469 = vadd.f32 %v453, -0.28449672
  %v470 = vadd.f32 %v454, -0.28449672
  %v471 = vadd.f32 %v455, -0.28449672
  %v472 = vadd.f32 %v456, -0.28449672
  %v473 = vadd.f32 %v457, -0.28449672
  %v474 = vadd.f32 %v458, -0.28449672
  %v475 = vadd.f32 %v459, -0.28449672
  %v476 = vadd.f32 %v460, -0.28449672
  %v477 = vmul.f32 %v461, %v365
  %v478 = vmul.f32 %v462, %v366
  %v479 = vmul.f32 %v463, %v367
  %v480 = vmul.f32 %v464, %v368
  %v481 = vmul.f32 %v465, %v369
  %v482 = vmul.f32 %v466, %v370
  %v483 = vmul.f32 %v467, %v371
  %v484 = vmul.f32 %v468, %v372
  %v485 = vmul.f32 %v469, %v373
  %v486 = vmul.f32 %v470, %v374
  %v487 = vmul.f32 %v471, %v375
  %v488 = vmul.f32 %v472, %v376
  %v489 = vmul.f32 %v473, %v377
  %v490 = vmul.f32 %v474, %v378
  %v491 = vmul.f32 %v475, %v379
  %v492 = vmul.f32 %v476, %v380
  %v493 = vadd.f32 %v477, 0.2548296
  %v494 = vadd.f32 %v478, 0.2548296
  %v495 = vadd.f32 %v479, 0.2548296
  %v496 = vadd.f32 %v480, 0.2548296
  %v497 = vadd.f32 %v481, 0.2548296
  %v498 = vadd.f32 %v482, 0.2548296
  %v499 = vadd.f32 %v483, 0.2548296
  %v500 = vadd.f32 %v484, 0.2548296
  %v501 = vadd.f32 %v485, 0.2548296
  %v502 = vadd.f32 %v486, 0.2548296
  %v503 = vadd.f32 %v487, 0.2548296
  %v504 = vadd.f32 %v488, 0.2548296
  %v505 = vadd.f32 %v489, 0.2548296
  %v506 = vadd.f32 %v490, 0.2548296
  %v507 = vadd.f32 %v491, 0.2548296
  %v508 = vadd.f32 %v492, 0.2548296
  %v509 = vmul.f32 %v493, %v365
  %v510 = vmul.f32 %v494, %v366
  %v511 = vmul.f32 %v495, %v367
  %v512 = vmul.f32 %v496, %v368
  %v513 = vmul.f32 %v497, %v369
  %v514 = vmul.f32 %v498, %v370
  %v515 = vmul.f32 %v499, %v371
  %v516 = vmul.f32 %v500, %v372
  %v517 = vmul.f32 %v501, %v373
  %v518 = vmul.f32 %v502, %v374
  %v519 = vmul.f32 %v503, %v375
  %v520 = vmul.f32 %v504, %v376
  %v521 = vmul.f32 %v505, %v377
  %v522 = vmul.f32 %v506, %v378
  %v523 = vmul.f32 %v507, %v379
  %v524 = vmul.f32 %v508, %v380
  %v525 = vsub.f32 0.0, %v317
  %v526 = vsub.f32 0.0, %v318
  %v527 = vsub.f32 0.0, %v319
  %v528 = vsub.f32 0.0, %v320
  %v529 = vsub.f32 0.0, %v321
  %v530 = vsub.f32 0.0, %v322
  %v531 = vsub.f32 0.0, %v323
  %v532 = vsub.f32 0.0, %v324
  %v533 = vsub.f32 0.0, %v325
  %v534 = vsub.f32 0.0, %v326
  %v535 = vsub.f32 0.0, %v327
  %v536 = vsub.f32 0.0, %v328
  %v537 = vsub.f32 0.0, %v329
  %v538 = vsub.f32 0.0, %v330
  %v539 = vsub.f32 0.0, %v331
  %v540 = vsub.f32 0.0, %v332
  %v541 = vmul.f32 %v525, %v317
  %v542 = vmul.f32 %v526, %v318
  %v543 = vmul.f32 %v527, %v319
  %v544 = vmul.f32 %v528, %v320
  %v545 = vmul.f32 %v529, %v321
  %v546 = vmul.f32 %v530, %v322
  %v547 = vmul.f32 %v531, %v323
  %v548 = vmul.f32 %v532, %v324
  %v549 = vmul.f32 %v533, %v325
  %v550 = vmul.f32 %v534, %v326
  %v551 = vmul.f32 %v535, %v327
  %v552 = vmul.f32 %v536, %v328
  %v553 = vmul.f32 %v537, %v329
  %v554 = vmul.f32 %v538, %v330
  %v555 = vmul.f32 %v539, %v331
  %v556 = vmul.f32 %v540, %v332
  %v557 = vmul.f32 %v541, 1.442695
  %v558 = vpow.pop %v557
  %v559 = vmul.f32 %v542, 1.442695
  %v560 = vpow.pop %v559
  %v561 = vmul.f32 %v543, 1.442695
  %v562 = vpow.pop %v561
  %v563 = vmul.f32 %v544, 1.442695
  %v564 = vpow.pop %v563
  %v565 = vmul.f32 %v545, 1.442695
  %v566 = vpow.pop %v565
  %v567 = vmul.f32 %v546, 1.442695
  %v568 = vpow.pop %v567
  %v569 = vmul.f32 %v547, 1.442695
  %v570 = vpow.pop %v569
  %v571 = vmul.f32 %v548, 1.442695
  %v572 = vpow.pop %v571
  %v573 = vmul.f32 %v549, 1.442695
  %v574 = vpow.pop %v573
  %v575 = vmul.f32 %v550, 1.442695
  %v576 = vpow.pop %v575
  %v577 = vmul.f32 %v551, 1.442695
  %v578 = vpow.pop %v577
  %v579 = vmul.f32 %v552, 1.442695
  %v580 = vpow.pop %v579
  %v581 = vmul.f32 %v553, 1.442695
  %v582 = vpow.pop %v581
  %v583 = vmul.f32 %v554, 1.442695
  %v584 = vpow.pop %v583
  %v585 = vmul.f32 %v555, 1.442695
  %v586 = vpow.pop %v585
  %v587 = vmul.f32 %v556, 1.442695
  %v588 = vpow.pop %v587
  %v589 = vmul.f32 %v509, %v558
  %v590 = vmul.f32 %v510, %v560
  %v591 = vmul.f32 %v511, %v562
  %v592 = vmul.f32 %v512, %v564
  %v593 = vmul.f32 %v513, %v566
  %v594 = vmul.f32 %v514, %v568
  %v595 = vmul.f32 %v515, %v570
  %v596 = vmul.f32 %v516, %v572
  %v597 = vmul.f32 %v517, %v574
  %v598 = vmul.f32 %v518, %v576
  %v599 = vmul.f32 %v519, %v578
  %v600 = vmul.f32 %v520, %v580
  %v601 = vmul.f32 %v521, %v582
  %v602 = vmul.f32 %v522, %v584
  %v603 = vmul.f32 %v523, %v586
  %v604 = vmul.f32 %v524, %v588
  %v605 = vsub.f32 1.0, %v589
  %v606 = vsub.f32 1.0, %v590
  %v607 = vsub.f32 1.0, %v591
  %v608 = vsub.f32 1.0, %v592
  %v609 = vsub.f32 1.0, %v593
  %v610 = vsub.f32 1.0, %v594
  %v611 = vsub.f32 1.0, %v595
  %v612 = vsub.f32 1.0, %v596
  %v613 = vsub.f32 1.0, %v597
  %v614 = vsub.f32 1.0, %v598
  %v615 = vsub.f32 1.0, %v599
  %v616 = vsub.f32 1.0, %v600
  %v617 = vsub.f32 1.0, %v601
  %v618 = vsub.f32 1.0, %v602
  %v619 = vsub.f32 1.0, %v603
  %v620 = vsub.f32 1.0, %v604
  %v621 = vmul.f32 %v301, %v605
  %v622 = vmul.f32 %v302, %v606
  %v623 = vmul.f32 %v303, %v607
  %v624 = vmul.f32 %v304, %v608
  %v625 = vmul.f32 %v305, %v609
  %v626 = vmul.f32 %v306, %v610
  %v627 = vmul.f32 %v307, %v611
  %v628 = vmul.f32 %v308, %v612
  %v629 = vmul.f32 %v309, %v613
  %v630 = vmul.f32 %v310, %v614
  %v631 = vmul.f32 %v311, %v615
  %v632 = vmul.f32 %v312, %v616
  %v633 = vmul.f32 %v313, %v617
  %v634 = vmul.f32 %v314, %v618
  %v635 = vmul.f32 %v315, %v619
  %v636 = vmul.f32 %v316, %v620
  %v637 = vadd.f32 %v621, 1.0
  %v638 = vadd.f32 %v622, 1.0
  %v639 = vadd.f32 %v623, 1.0
  %v640 = vadd.f32 %v624, 1.0
  %v641 = vadd.f32 %v625, 1.0
  %v642 = vadd.f32 %v626, 1.0
  %v643 = vadd.f32 %v627, 1.0
  %v644 = vadd.f32 %v628, 1.0
  %v645 = vadd.f32 %v629, 1.0
  %v646 = vadd.f32 %v630, 1.0
  %v647 = vadd.f32 %v631, 1.0
  %v648 = vadd.f32 %v632, 1.0
  %v649 = vadd.f32 %v633, 1.0
  %v650 = vadd.f32 %v634, 1.0
  %v651 = vadd.f32 %v635, 1.0
  %v652 = vadd.f32 %v636, 1.0
  %v653 = vmul.f32 %v253, %v637
  %v654 = vmul.f32 %v254, %v638
  %v655 = vmul.f32 %v255, %v639
  %v656 = vmul.f32 %v256, %v640
  %v657 = vmul.f32 %v257, %v641
  %v658 = vmul.f32 %v258, %v642
  %v659 = vmul.f32 %v259, %v643
  %v660 = vmul.f32 %v260, %v644
  %v661 = vmul.f32 %v261, %v645
  %v662 = vmul.f32 %v262, %v646
  %v663 = vmul.f32 %v263, %v647
  %v664 = vmul.f32 %v264, %v648
  %v665 = vmul.f32 %v265, %v649
  %v666 = vmul.f32 %v266, %v650
  %v667 = vmul.f32 %v267, %v651
  %v668 = vmul.f32 %v268, %v652
  %v669 = vpack.c.bf16 %v654, %v653
  %v670 = vpack.c.bf16 %v656, %v655
  %v671 = vpack.c.bf16 %v658, %v657
  %v672 = vpack.c.bf16 %v660, %v659
  %v673 = vpack.c.bf16 %v662, %v661
  %v674 = vpack.c.bf16 %v664, %v663
  %v675 = vpack.c.bf16 %v666, %v665
  %v676 = vpack.c.bf16 %v668, %v667
  %v677 = vld [vmem:[%s3] sm:$0xf]
  %v678 = vld [vmem:[%s3 + $0x4] sm:$0xf]
  %v679 = vld [vmem:[%s3 + $0x8] sm:$0xf]
  %v680 = vld [vmem:[%s3 + $0xc] sm:$0xf]
  %v681 = vld [vmem:[%s3 + $0x10] sm:$0xf]
  %v682 = vld [vmem:[%s3 + $0x14] sm:$0xf]
  %v683 = vld [vmem:[%s3 + $0x18] sm:$0xf]
  %v684 = vld [vmem:[%s3 + $0x1c] sm:$0xf]
  %v685 = vld [vmem:[%s3 + $0x20] sm:$0xf]
  %v686 = vld [vmem:[%s3 + $0x24] sm:$0xf]
  %v687 = vld [vmem:[%s3 + $0x28] sm:$0xf]
  %v688 = vld [vmem:[%s3 + $0x2c] sm:$0xf]
  %v689 = vld [vmem:[%s3 + $0x30] sm:$0xf]
  %v690 = vld [vmem:[%s3 + $0x34] sm:$0xf]
  %v691 = vld [vmem:[%s3 + $0x38] sm:$0xf]
  %v692 = vld [vmem:[%s3 + $0x3c] sm:$0xf]
  %v693 = vld [vmem:[%s4] sm:$0x1]
  %v695 = vlaneseq
  %v696 = vshrl.u32 %v695, 7
  %v697 = vsub.s32 0, %v696
  %v698 = vrot.slane %v693, %v697
  %v716 = vunpack.c.l.b16 %v677
  %v717 = vunpack.c.l.b16 %v678
  %v718 = vunpack.c.l.b16 %v679
  %v719 = vunpack.c.l.b16 %v680
  %v720 = vunpack.c.l.b16 %v681
  %v721 = vunpack.c.l.b16 %v682
  %v722 = vunpack.c.l.b16 %v683
  %v723 = vunpack.c.l.b16 %v684
  %v724 = vunpack.c.l.b16 %v685
  %v725 = vunpack.c.l.b16 %v686
  %v726 = vunpack.c.l.b16 %v687
  %v727 = vunpack.c.l.b16 %v688
  %v728 = vunpack.c.l.b16 %v689
  %v729 = vunpack.c.l.b16 %v690
  %v730 = vunpack.c.l.b16 %v691
  %v731 = vunpack.c.l.b16 %v692
  %v732 = vpack.c.b16 %v717, %v716
  %v733 = vpack.c.b16 %v719, %v718
  %v734 = vpack.c.b16 %v721, %v720
  %v735 = vpack.c.b16 %v723, %v722
  %v736 = vpack.c.b16 %v725, %v724
  %v737 = vpack.c.b16 %v727, %v726
  %v738 = vpack.c.b16 %v729, %v728
  %v739 = vpack.c.b16 %v731, %v730
  %748 = vmatprep.subr.bf16.mxu0 0
  %749 = vmatpush1.bf16.msra.mxu0 %v739
  %750 = vmatprep.subr.bf16.mxu0 0
  %751 = vmatpush1.bf16.msra.mxu0 %v738
  %752 = vmatprep.subr.bf16.mxu0 0
  %753 = vmatpush1.bf16.msra.mxu0 %v737
  %754 = vmatprep.subr.bf16.mxu0 0
  %755 = vmatpush1.bf16.msra.mxu0 %v736
  %756 = vmatprep.subr.bf16.mxu0 0
  %757 = vmatpush1.bf16.msra.mxu0 %v735
  %758 = vmatprep.subr.bf16.mxu0 0
  %759 = vmatpush1.bf16.msra.mxu0 %v734
  %760 = vmatprep.subr.bf16.mxu0 0
  %761 = vmatpush1.bf16.msra.mxu0 %v733
  %762 = vmatprep.subr.bf16.mxu0 0
  %763 = vmatpush1.bf16.msra.mxu0 %v732
  %764 = vmatprep.subr.bf16.mxu0 0
  %765 = vmatpush2.bf16.msra.mxu0 0
  %766 = vmatprep.subr.bf16.mxu0 0
  %767 = vmatpush2.bf16.msra.mxu0 0
  %768 = vmatprep.subr.bf16.mxu0 0
  %769 = vmatpush2.bf16.msra.mxu0 0
  %770 = vmatprep.subr.bf16.mxu0 0
  %771 = vmatpush2.bf16.msra.mxu0 0
  %772 = vmatprep.subr.bf16.mxu0 0
  %773 = vmatpush2.bf16.msra.mxu0 0
  %774 = vmatprep.subr.bf16.mxu0 0
  %775 = vmatpush2.bf16.msra.mxu0 0
  %776 = vmatprep.subr.bf16.mxu0 0
  %777 = vmatpush2.bf16.msra.mxu0 0
  %778 = vmatprep.subr.bf16.mxu0 0
  %779 = vmatpush2.bf16.msra.mxu0 0
  %780 = vmatprep.mubr.bf16.mxu0 0
  %781 = vmatmul.mubr.bf16.gmra.mxu0 %v669
  %v782 = vpop.f32.mrf.mxu0
  %v783 = vadd.f32 %v698, %v782
  %v784 = vpop.f32.mrf.mxu0
  %v785 = vpop.f32.mrf.mxu0
  %v786 = vadd.f32 %v698, %v785
  %v787 = vpop.f32.mrf.mxu0
  %788 = vmatprep.mubr.bf16.mxu0 0
  %789 = vmatmul.mubr.bf16.gmra.mxu0 %v670
  %v790 = vpop.f32.mrf.mxu0
  %v791 = vadd.f32 %v698, %v790
  %v792 = vpop.f32.mrf.mxu0
  %v793 = vpop.f32.mrf.mxu0
  %v794 = vadd.f32 %v698, %v793
  %v795 = vpop.f32.mrf.mxu0
  %796 = vmatprep.mubr.bf16.mxu0 0
  %797 = vmatmul.mubr.bf16.gmra.mxu0 %v671
  %v798 = vpop.f32.mrf.mxu0
  %v799 = vadd.f32 %v698, %v798
  %v800 = vpop.f32.mrf.mxu0
  %v801 = vpop.f32.mrf.mxu0
  %v802 = vadd.f32 %v698, %v801
  %v803 = vpop.f32.mrf.mxu0
  %804 = vmatprep.mubr.bf16.mxu0 0
  %805 = vmatmul.mubr.bf16.gmra.mxu0 %v672
  %v806 = vpop.f32.mrf.mxu0
  %v807 = vadd.f32 %v698, %v806
  %v808 = vpop.f32.mrf.mxu0
  %v809 = vpop.f32.mrf.mxu0
  %v810 = vadd.f32 %v698, %v809
  %v811 = vpop.f32.mrf.mxu0
  %812 = vmatprep.mubr.bf16.mxu0 0
  %813 = vmatmul.mubr.bf16.gmra.mxu0 %v673
  %v814 = vpop.f32.mrf.mxu0
  %v815 = vadd.f32 %v698, %v814
  %v816 = vpop.f32.mrf.mxu0
  %v817 = vpop.f32.mrf.mxu0
  %v818 = vadd.f32 %v698, %v817
  %v819 = vpop.f32.mrf.mxu0
  %820 = vmatprep.mubr.bf16.mxu0 0
  %821 = vmatmul.mubr.bf16.gmra.mxu0 %v674
  %v822 = vpop.f32.mrf.mxu0
  %v823 = vadd.f32 %v698, %v822
  %v824 = vpop.f32.mrf.mxu0
  %v825 = vpop.f32.mrf.mxu0
  %v826 = vadd.f32 %v698, %v825
  %v827 = vpop.f32.mrf.mxu0
  %828 = vmatprep.mubr.bf16.mxu0 0
  %829 = vmatmul.mubr.bf16.gmra.mxu0 %v675
  %v830 = vpop.f32.mrf.mxu0
  %v831 = vadd.f32 %v698, %v830
  %v832 = vpop.f32.mrf.mxu0
  %v833 = vpop.f32.mrf.mxu0
  %v834 = vadd.f32 %v698, %v833
  %v835 = vpop.f32.mrf.mxu0
  %836 = vmatprep.mubr.bf16.mxu0 0
  %837 = vmatmul.mubr.bf16.gmra.mxu0 %v676
  %v838 = vpop.f32.mrf.mxu0
  %v839 = vadd.f32 %v698, %v838
  %v840 = vpop.f32.mrf.mxu0
  %v841 = vpop.f32.mrf.mxu0
  %v842 = vadd.f32 %v698, %v841
  %v843 = vpop.f32.mrf.mxu0
  %844 = vdwg.mxu0
  %845 = vst [vmem:[%s5] sm:$0xff] %v783
  %846 = vst [vmem:[%s5 + $0x8] sm:$0xff] %v786
  %847 = vst [vmem:[%s5 + $0x10] sm:$0xff] %v791
  %848 = vst [vmem:[%s5 + $0x18] sm:$0xff] %v794
  %849 = vst [vmem:[%s5 + $0x20] sm:$0xff] %v799
  %850 = vst [vmem:[%s5 + $0x28] sm:$0xff] %v802
  %851 = vst [vmem:[%s5 + $0x30] sm:$0xff] %v807
  %852 = vst [vmem:[%s5 + $0x38] sm:$0xff] %v810
  %853 = vst [vmem:[%s5 + $0x40] sm:$0xff] %v815
  %854 = vst [vmem:[%s5 + $0x48] sm:$0xff] %v818
  %855 = vst [vmem:[%s5 + $0x50] sm:$0xff] %v823
  %856 = vst [vmem:[%s5 + $0x58] sm:$0xff] %v826
  %857 = vst [vmem:[%s5 + $0x60] sm:$0xff] %v831
  %858 = vst [vmem:[%s5 + $0x68] sm:$0xff] %v834
  %859 = vst [vmem:[%s5 + $0x70] sm:$0xff] %v839
  %860 = vst [vmem:[%s5 + $0x78] sm:$0xff] %v842
  // Predicated region
  $region22: #{mlp_forward_prepared.1} parent=0 // pred_check
    _
  $region23: #{mlp_forward_prepared.1} parent=0 // pred_check_branch
    %862 = sbr.rel (0) target = $region25
  $region24: #{mlp_forward_prepared.1} parent=0 // pred_region
    _
  $region25: #{mlp_forward_prepared.1} parent=0 // pred_fallthru
    _
  // Predicated region
  $region26: #{mlp_forward_prepared.1} parent=0 // pred_check
    _
  $region27: #{mlp_forward_prepared.1} parent=0 // pred_check_branch
    %864 = sbr.rel (0) target = $region29
  $region28: #{mlp_forward_prepared.1} parent=0 // pred_region
    _
  $region29: #{mlp_forward_prepared.1} parent=0 // pred_fallthru
    _

</llo_original>
